<compile_context>
chip_gen: v5e
topology: v5e:2x2
jax: 0.10.0
libtpu: 0.0.40
codegen_flags: <defaults>
</compile_context>

<pallas_src>
import functools

import jax
import jax.numpy as jnp
from jax import lax
from jax.experimental import pallas as pl
from jax.experimental.pallas import tpu as pltpu

# ----------------------------- config (small, toy) -----------------------------
B = 2            # batch
S = 8            # sequence length
H = 128          # hidden size (lane-dense last dim)
NH = 2           # attention heads
DH = H // NH     # head dim (64)
M = 256          # mlp intermediate
V = 256          # vocab size
L = 2            # decoder layers
EPS = 1e-6
BS = B * S
SCALE = float(DH) ** -0.5
NEG_INF = -1e30
TV = 128         # lm_head vocab tile (lane-dense)

DTYPE = jnp.float32      # residual stream / norms / softmax
W_DTYPE = jnp.bfloat16   # matmul weights
CD = jnp.bfloat16        # matmul-input compute dtype (f32 accumulation on MXU)


# ----------------------------- kernel helpers -----------------------------
def _rmsnorm(x, w):
    x = x.astype(jnp.float32)
    var = jnp.mean(x * x, axis=-1, keepdims=True)
    return x * lax.rsqrt(var + EPS) * w.astype(jnp.float32)


# ----------------------------- Pallas kernels -----------------------------
def decoder_layer_kernel(x_ref, cos_ref, sina_ref, sinb_ref, bias_ref,
                         attn_nw_ref, wqkv_ref, wo_ref,
                         ffn_nw_ref, wgu_ref, wd_ref, final_nw_ref,
                         out_ref, resid_ref, *, shift_minus, shift_plus):
    """One decoder layer per grid step; residual carried in VMEM scratch.

    Per-step (layer l) shapes:
      x/cos/sina/sinb: (BS, H)   bias: (S, S)
      wqkv: (H, 3H)  wo: (H, H)  wgu: (H, 2M)  wd: (M, H)   norms: (1, H)
    """
    f32 = jnp.float32
    l = pl.program_id(0)
    nl = pl.num_programs(0)

    @pl.when(l == 0)
    def _():
        resid_ref[...] = x_ref[...].astype(f32)

    x = resid_ref[...]                       # (BS, H) f32 residual stream
    cos = cos_ref[...]
    sina = sina_ref[...]
    sinb = sinb_ref[...]
    bias = bias_ref[...]                     # (S, S) additive causal bias

    # ---------------- attention block ----------------
    h = _rmsnorm(x, attn_nw_ref[...])                                # (BS, H)
    qkv = jnp.dot(h.astype(CD), wqkv_ref[...],
                  preferred_element_type=f32)                        # (BS, 3H)
    q = qkv[:, :H]
    k = qkv[:, H:2 * H]
    v = qkv[:, 2 * H:]

    # RoPE in lane-dense (BS, 128) layout.  Per-head rotate-half is expressed
    # as two full-width rolls (XLU) with sin tables that are zero outside the
    # correct half of each head (sign + segmentation folded in the wrapper).
    q = q * SCALE                                                    # fold 1/sqrt(DH)
    q = q * cos + pltpu.roll(q, shift_minus, 1) * sina \
                + pltpu.roll(q, shift_plus, 1) * sinb
    k = k * cos + pltpu.roll(k, shift_minus, 1) * sina \
                + pltpu.roll(k, shift_plus, 1) * sinb

    # Per-head causal attention.  NH is tiny & static here; real-scale would
    # put heads on the grid with flash-style key tiling (see TODO above).
    head_outs = []
    for hd in range(NH):
        lo = hd * DH
        qh = q[:, lo:lo + DH].reshape(B, S, DH).astype(CD)
        kh = k[:, lo:lo + DH].reshape(B, S, DH).astype(CD)
        vh = v[:, lo:lo + DH].reshape(B, S, DH).astype(CD)
        s = jnp.einsum('bqd,bkd->bqk', qh, kh,
                       preferred_element_type=f32)                   # (B, S, S)
        s = s + bias
        s = s - jnp.max(s, axis=-1, keepdims=True)
        p = jnp.exp(s)
        p = p * pl.reciprocal(jnp.sum(p, axis=-1, keepdims=True), approx=True)
        oh = jnp.einsum('bqk,bkd->bqd', p.astype(CD), vh,
                        preferred_element_type=f32)                  # (B, S, DH)
        head_outs.append(oh.reshape(BS, DH))
    o = jnp.concatenate(head_outs, axis=-1)                          # (BS, H) head-major
    attn = jnp.dot(o.astype(CD), wo_ref[...], preferred_element_type=f32)
    x = x + attn

    # ---------------- SwiGLU MLP block ----------------
    h2 = _rmsnorm(x, ffn_nw_ref[...]).astype(CD)
    gu = jnp.dot(h2, wgu_ref[...], preferred_element_type=f32)       # (BS, 2M)
    gate = gu[:, :M]
    up = gu[:, M:]
    act = (gate * jax.nn.sigmoid(gate) * up).astype(CD)
    x = x + jnp.dot(act, wd_ref[...], preferred_element_type=f32)

    resid_ref[...] = x

    @pl.when(l == nl - 1)
    def _():
        out_ref[...] = _rmsnorm(x, final_nw_ref[...]).astype(out_ref.dtype)


def lm_head_kernel(x_ref, wlm_ref, out_ref):
    """Vocabulary projection, tiled over V (lane-dense 128-wide blocks)."""
    out_ref[...] = jnp.dot(x_ref[...].astype(CD), wlm_ref[...],
                           preferred_element_type=jnp.float32).astype(out_ref.dtype)


def _roll_probe_kernel(x_ref, o_ref):
    o_ref[...] = pltpu.roll(x_ref[...], DH // 2, 1)


def _probe_roll_shifts():
    """Resolve pltpu.roll's shift direction once.

    Returns (shift_minus, shift_plus) such that on a 128-wide lane axis
      roll(x, shift_minus)[i] == x[(i + DH//2) % H]
      roll(x, shift_plus)[i]  == x[(i - DH//2) % H]
    """
    x = jnp.tile(jnp.arange(H, dtype=jnp.float32)[None, :], (8, 1))
    y = pl.pallas_call(_roll_probe_kernel,
                       out_shape=jax.ShapeDtypeStruct((8, H), jnp.float32))(x)
    if bool(jnp.array_equal(y, jnp.roll(x, DH // 2, axis=1))):
        return H - DH // 2, DH // 2     # jnp.roll semantics
    return DH // 2, H - DH // 2         # opposite convention


# ----------------------------- model wrapper -----------------------------
class InternVLChatModelPallas:
    """JAX/Pallas counterpart of lmdeploy's InternVLChatModel (non-mono path)."""

    def __init__(self, params):
        self.params = params
        self.is_mono = False
        # TODO(synk): mono (InternLM2VE) vision/text split-expert forward not implemented.
        self._shift_minus, self._shift_plus = _probe_roll_shifts()
        self._layer_kernel = functools.partial(
            decoder_layer_kernel,
            shift_minus=self._shift_minus,
            shift_plus=self._shift_plus)

    # --- embedding helpers (glue, plain JAX) ---
    def get_input_embeddings(self):
        emb = self.params["tok_emb"]
        return lambda ids: emb[ids]

    def prepare_inputs_for_generation(self, input_ids, position_ids,
                                      vision_embeddings=None,
                                      vision_embedding_indexing=None,
                                      inputs_embeds=None,
                                      past_key_values=None,
                                      attn_metadata=None):
        if vision_embeddings is not None and vision_embeddings.shape[0] > 0:
            if inputs_embeds is None:
                inputs_embeds = self.get_input_embeddings()(input_ids)
            inputs_embeds = inputs_embeds.at[:, vision_embedding_indexing, :].set(
                vision_embeddings.astype(inputs_embeds.dtype))
        return dict(input_ids=input_ids, position_ids=position_ids,
                    past_key_values=past_key_values, attn_metadata=attn_metadata,
                    inputs_embeds=inputs_embeds)

    # --- wrapper-side RoPE tables (lane-dense (BS, H), masked sign folded in) ---
    def _rope_tables(self, position_ids):
        pos = position_ids.reshape(BS).astype(jnp.float32)
        inv_freq = 1.0 / (10000.0 ** (jnp.arange(0, DH, 2, dtype=jnp.float32) / DH))
        ang = pos[:, None] * inv_freq[None, :]                 # (BS, DH//2)
        ang = jnp.tile(ang, (1, H // (DH // 2)))               # (BS, H): angle[lane % 32]
        cos = jnp.cos(ang)
        sin = jnp.sin(ang)
        lane = jnp.arange(H)
        first_half = (lane % DH) < (DH // 2)
        sina = jnp.where(first_half[None, :], -sin, 0.0)       # pairs with roll(x -> x[i+32])
        sinb = jnp.where(first_half[None, :], 0.0, sin)        # pairs with roll(x -> x[i-32])
        return cos, sina, sinb

    # --- forward: layer-gridded decoder stack, weights streamed per layer ---
    def forward(self, input_ids, position_ids, past_key_values=None,
                attn_metadata=None, inputs_embeds=None, **kwargs):
        # TODO(synk): past_key_values / attn_metadata paged decode path not modeled.
        if inputs_embeds is None:
            inputs_embeds = self.get_input_embeddings()(input_ids)

        cos, sina, sinb = self._rope_tables(position_ids)
        idx = jnp.arange(S)
        bias = jnp.where(idx[:, None] >= idx[None, :], 0.0, NEG_INF).astype(jnp.float32)
        x2d = inputs_embeds.reshape(BS, H).astype(DTYPE)
        p = self.params

        flops_per_layer = (2 * BS * H * 3 * H
                           + 2 * B * NH * 2 * S * S * DH
                           + 2 * BS * H * H
                           + 2 * BS * H * 2 * M
                           + 2 * BS * M * H)
        weight_bytes_per_layer = 2 * (H * 3 * H + H * H + H * 2 * M + M * H)
        cost = pl.CostEstimate(
            flops=int(L * flops_per_layer),
            transcendentals=int(L * (B * NH * S * S + BS * M)),
            bytes_accessed=int(L * weight_bytes_per_layer + 4 * (5 * BS * H + S * S)))

        grid_spec = pltpu.PrefetchScalarGridSpec(
            num_scalar_prefetch=0,
            grid=(L,),
            in_specs=[
                pl.BlockSpec((BS, H), lambda l: (0, 0)),              # x (embeddings)
                pl.BlockSpec((BS, H), lambda l: (0, 0)),              # cos
                pl.BlockSpec((BS, H), lambda l: (0, 0)),              # sin (first-half, signed)
                pl.BlockSpec((BS, H), lambda l: (0, 0)),              # sin (second-half)
                pl.BlockSpec((S, S), lambda l: (0, 0)),               # causal bias
                pl.BlockSpec((None, 1, H), lambda l: (l, 0, 0)),      # attn norm
                pl.BlockSpec((None, H, 3 * H), lambda l: (l, 0, 0)),  # fused wqkv
                pl.BlockSpec((None, H, H), lambda l: (l, 0, 0)),      # wo
                pl.BlockSpec((None, 1, H), lambda l: (l, 0, 0)),      # ffn norm
                pl.BlockSpec((None, H, 2 * M), lambda l: (l, 0, 0)),  # fused gate/up
                pl.BlockSpec((None, M, H), lambda l: (l, 0, 0)),      # wd
                pl.BlockSpec((1, H), lambda l: (0, 0)),               # final norm
            ],
            out_specs=pl.BlockSpec((BS, H), lambda l: (0, 0)),
            scratch_shapes=[pltpu.VMEM((BS, H), jnp.float32)],        # residual stream
        )

        hidden = pl.pallas_call(
            self._layer_kernel,
            grid_spec=grid_spec,
            out_shape=jax.ShapeDtypeStruct((BS, H), DTYPE),
            compiler_params=pltpu.CompilerParams(
                dimension_semantics=("arbitrary",),
                vmem_limit_bytes=32 * 1024 * 1024),
            cost_estimate=cost,
        )(x2d, cos, sina, sinb, bias,
          p["attn_norm"], p["wqkv"], p["wo"],
          p["ffn_norm"], p["wgu"], p["wd"], p["final_norm"])
        return hidden.reshape(B, S, H)

    def get_logits(self, hidden_states):
        h2d = hidden_states.reshape(BS, H).astype(DTYPE)
        cost = pl.CostEstimate(flops=2 * BS * H * V, transcendentals=0,
                               bytes_accessed=2 * H * V + 4 * (BS * H + BS * V))
        logits = pl.pallas_call(
            lm_head_kernel,
            grid_spec=pltpu.PrefetchScalarGridSpec(
                num_scalar_prefetch=0,
                grid=(V // TV,),
                in_specs=[pl.BlockSpec((BS, H), lambda j: (0, 0)),
                          pl.BlockSpec((H, TV), lambda j: (0, j))],
                out_specs=pl.BlockSpec((BS, TV), lambda j: (0, j))),
            out_shape=jax.ShapeDtypeStruct((BS, V), DTYPE),
            compiler_params=pltpu.CompilerParams(
                dimension_semantics=("parallel",),
                vmem_limit_bytes=32 * 1024 * 1024),
            cost_estimate=cost,
        )(h2d, self.params["w_lm"])
        return logits.reshape(B, S, V)


# ----------------------------- param init -----------------------------
def init_params(key):
    def w(k, shape, scale=0.05):
        return (jax.random.normal(k, shape, jnp.float32) * scale).astype(W_DTYPE)

    keys = jax.random.split(key, 8)
    return {
        "tok_emb": (jax.random.normal(keys[0], (V, H), jnp.float32) * 0.02).astype(DTYPE),
        "final_norm": jnp.ones((1, H), jnp.float32),
        "w_lm": w(keys[1], (H, V), 0.02),
        "attn_norm": jnp.ones((L, 1, H), jnp.float32),
        "ffn_norm": jnp.ones((L, 1, H), jnp.float32),
        # fused, lane-dense weight layouts
        "wqkv": w(keys[2], (L, H, 3 * H)),   # cols: [q | k | v], head-major within each
        "wo": w(keys[3], (L, H, H)),         # rows: head-major concatenated head outputs
        "wgu": w(keys[4], (L, H, 2 * M)),    # cols: [gate | up]
        "wd": w(keys[5], (L, M, H)),
    }


# ----------------------------- pure-JAX reference -----------------------------
def reference_forward(params, inputs_embeds, position_ids):
    """Standard rotate-half MHA + SwiGLU reference (mirrors the kernel's bf16 casts)."""
    f32 = jnp.float32
    x = inputs_embeds.reshape(BS, H).astype(f32)
    pos = position_ids.reshape(BS).astype(f32)
    inv_freq = 1.0 / (10000.0 ** (jnp.arange(0, DH, 2, dtype=f32) / DH))
    ang = pos[:, None] * inv_freq[None, :]
    ang = jnp.concatenate([ang, ang], axis=-1)            # (BS, DH)
    cos = jnp.cos(ang)[:, None, :]
    sin = jnp.sin(ang)[:, None, :]
    idx = jnp.arange(S)
    causal = idx[:, None] >= idx[None, :]

    def rms(v, w):
        v = v.astype(f32)
        return v * lax.rsqrt(jnp.mean(v * v, -1, keepdims=True) + EPS) * w.astype(f32)

    def mm(a, b):
        return jnp.dot(a.astype(W_DTYPE).astype(f32), b.astype(f32))

    def rot_half(t):
        return jnp.concatenate([-t[..., DH // 2:], t[..., :DH // 2]], axis=-1)

    for l in range(L):
        h = rms(x, params["attn_norm"][l])
        qkv = mm(h, params["wqkv"][l])
        q = qkv[:, :H].reshape(BS, NH, DH)
        k = qkv[:, H:2 * H].reshape(BS, NH, DH)
        v = qkv[:, 2 * H:].reshape(BS, NH, DH)
        q = q * cos + rot_half(q) * sin
        k = k * cos + rot_half(k) * sin
        q = q.reshape(B, S, NH, DH)
        k = k.reshape(B, S, NH, DH)
        v = v.reshape(B, S, NH, DH)
        s = jnp.einsum('bqhd,bkhd->bhqk',
                       q.astype(W_DTYPE).astype(f32),
                       k.astype(W_DTYPE).astype(f32)) * SCALE
        s = jnp.where(causal[None, None], s, -jnp.inf)
        p = jax.nn.softmax(s, axis=-1)
        o = jnp.einsum('bhqk,bkhd->bqhd',
                       p.astype(W_DTYPE).astype(f32),
                       v.astype(W_DTYPE).astype(f32)).reshape(BS, H)
        x = x + mm(o, params["wo"][l])
        h2 = rms(x, params["ffn_norm"][l])
        gu = mm(h2, params["wgu"][l])
        gate, up = gu[:, :M], gu[:, M:]
        act = gate * jax.nn.sigmoid(gate) * up
        x = x + mm(act, params["wd"][l])
    hidden = rms(x, params["final_norm"])
    logits = mm(hidden, params["w_lm"])
    return hidden.reshape(B, S, H), logits.reshape(B, S, V)


# ----------------------------- main -----------------------------
if __name__ == "__main__":
    key = jax.random.PRNGKey(0)
    k_param, k_ids, k_vis = jax.random.split(key, 3)

    params = init_params(k_param)
    model = InternVLChatModelPallas(params)

    input_ids = jax.random.randint(k_ids, (B, S), 0, V)
    position_ids = jnp.broadcast_to(jnp.arange(S, dtype=jnp.int32)[None, :], (B, S))

    # pretend the first 3 positions hold vision tokens
    vision_embedding_indexing = jnp.array([0, 1, 2], dtype=jnp.int32)
    vision_embeddings = jax.random.normal(k_vis, (3, H), dtype=jnp.float32) * 0.02

    inputs = model.prepare_inputs_for_generation(
        input_ids, position_ids,
        vision_embeddings=vision_embeddings,
        vision_embedding_indexing=vision_embedding_indexing)

    hidden = model.forward(**inputs)
    logits = model.get_logits(hidden)
    jax.block_until_ready((hidden, logits))

    assert hidden.shape == (B, S, H) and logits.shape == (B, S, V)
    assert bool(jnp.isfinite(hidden).all()) and bool(jnp.isfinite(logits).all())

    # numerical check vs. a pure-JAX rotate-half reference (covers the folded
    # RoPE tables, pltpu.roll direction, fused-weight layouts, causal masking).
    ref_hidden, ref_logits = reference_forward(params, inputs["inputs_embeds"],
                                               position_ids)
    assert bool(jnp.allclose(hidden, ref_hidden, atol=5e-2, rtol=5e-2)), (
        "hidden mismatch vs reference: max abs diff = "
        f"{float(jnp.max(jnp.abs(hidden - ref_hidden)))}")
    assert bool(jnp.allclose(logits, ref_logits, atol=5e-2, rtol=5e-2)), (
        "logits mismatch vs reference: max abs diff = "
        f"{float(jnp.max(jnp.abs(logits - ref_logits)))}")

    print("KERNEL_OK")
</pallas_src>

<mosaic_0001>
module attributes {stable_mosaic.version = 11 : i64} {
  func.func @_roll_probe_kernel(%arg0: memref<8x128xf32, #tpu.memory_space<vmem>>, %arg1: memref<8x128xf32, #tpu.memory_space<vmem>>) attributes {dimension_semantics = [], scalar_prefetch = 0 : i64, scratch_operands = 0 : i64, tpu.core_type = #tpu.core_type<tc>} {
    %c0 = arith.constant 0 : index
    %c0_0 = arith.constant 0 : index
    %0 = vector.load %arg0[%c0, %c0_0] : memref<8x128xf32, #tpu.memory_space<vmem>>, vector<8x128xf32>
    %c32_i32 = arith.constant 32 : i32
    %1 = tpu.dynamic_rotate %0 by %c32_i32 dim 1 : vector<8x128xf32>, i32 -> vector<8x128xf32>
    %c0_1 = arith.constant 0 : index
    %c0_2 = arith.constant 0 : index
    %2 = vector.load %arg1[%c0_1, %c0_2] : memref<8x128xf32, #tpu.memory_space<vmem>>, vector<8x128xf32>
    tpu.vector_store %arg1[%c0_1, %c0_2], %1 {strides = array<i32>} : memref<8x128xf32, #tpu.memory_space<vmem>>, vector<8x128xf32>,
    return
  }
}

</mosaic_0001>

<llo_original>
// kernel: tpu_custom_call.1
$region0: #{tpu_custom_call.1}
  #allocation0 [shape = 'u32[]', space=smem, size = 0x4, offset = 0x4, fixed_abs, tag = 'smem constant byte address 0x4 - core index']
  #allocation1 [shape = 'u32[72,128]{1,0:T(1,128)}', space=vmem, size = 0x9000, scoped, tag = 'internal scratch']
  %s0 = inlined_call_operand.hbm [shape: f32[8,128], index: 0, kind: input, shape index: {}]
  %s1 = inlined_call_operand.hbm [shape: f32[8,128], index: 1, kind: output, shape index: {}]
  %s2 = sld [smem:[#allocation0]]
  $region18: #{tpu_custom_call.1} parent=0
    _
  %s4 = ssub.s32 1, %s2
  %s5 = scalar_select 0, %s4, %s2
  $region1: #{tpu_custom_call.1} parent=0
    #allocation2 [shape = 'u8[4096]{0}', space=vmem, size = 0x1000, scoped, tag = 'input window, operand 0, single buffered']
    #allocation3 [shape = 's32[1]{0}', space=sflag, size = 0x4, scoped, tag = 'scoped memory for tpu_custom_call.1']
    #allocation4 [shape = 's32[1]{0}', space=sflag, size = 0x4, scoped, tag = 'scoped memory for tpu_custom_call.1']
    #allocation5 [shape = 'u8[4096]{0}', space=vmem, size = 0x1000, scoped, tag = 'output window, operand 0, single buffered']
    %6 = vsyncpa [#allocation3], 0
    %7 = vsyncpa [#allocation4], 0
    // Predicated region
    $region2: #{tpu_custom_call.1} parent=1 // pred_check
      _
    $region3: #{tpu_custom_call.1} parent=1 // pred_check_branch
      %9 = sbr.rel (0) target = $region5
    $region4: #{tpu_custom_call.1} parent=1 // pred_region
      %11 = vsyncadd [#allocation3], 0
      %s13 = sshll.u32 %s0, 4
      %s14 = int_to_ptr.hbm [resolvable:$true] %s13
      %s15 = sshll.u32 [#allocation2], 4
      %s16 = int_to_ptr.vmem [resolvable:$true] %s15
      %18 = dma.hbm_to_vmem [thread:$0]  %s14, 128, %s16, [#allocation3]
    $region5: #{tpu_custom_call.1} parent=1 // pred_fallthru
      _
    // Predicated region
    $region6: #{tpu_custom_call.1} parent=1 // pred_check
      _
    $region7: #{tpu_custom_call.1} parent=1 // pred_check_branch
      %20 = sbr.rel (0) target = $region9
    $region8: #{tpu_custom_call.1} parent=1 // pred_region
      %22 = dma.done [#allocation3], 128
    $region9: #{tpu_custom_call.1} parent=1 // pred_fallthru
      _
    %v23 = vld [vmem:[#allocation2] sm:$0xff]
    %24 = vrot.lane.b32.xlu0 %v23, 32
    %v25 = vpop.permute.xlu0 %24
    %26 = vst [vmem:[#allocation5] sm:$0xff] %v25
    // Predicated region
    $region10: #{tpu_custom_call.1} parent=1 // pred_check
      _
    $region11: #{tpu_custom_call.1} parent=1 // pred_check_branch
      %28 = sbr.rel (0) target = $region13
    $region12: #{tpu_custom_call.1} parent=1 // pred_region
      %30 = vsyncadd [#allocation4], 0
      %s32 = sshll.u32 [#allocation5], 4
      %s33 = int_to_ptr.vmem [resolvable:$true] %s32
      %s34 = sshll.u32 %s1, 4
      %s35 = int_to_ptr.hbm [resolvable:$true] %s34
      %37 = dma.vmem_to_hbm [thread:$0]  %s33, 128, %s35, [#allocation4]
    $region13: #{tpu_custom_call.1} parent=1 // pred_fallthru
      _
    // Predicated region
    $region14: #{tpu_custom_call.1} parent=1 // pred_check
      _
    $region15: #{tpu_custom_call.1} parent=1 // pred_check_branch
      %39 = sbr.rel (0) target = $region17
    $region16: #{tpu_custom_call.1} parent=1 // pred_region
      %41 = dma.done [#allocation4], 128
    $region17: #{tpu_custom_call.1} parent=1 // pred_fallthru
      _
    %42 = vsyncpa [#allocation3], 1
    %43 = vsyncpa [#allocation4], 1

</llo_original>
